<compile_context>
chip_gen: v6e
topology: v6e:2x2x1
jax: 0.10.0
libtpu: 0.0.40
codegen_flags: <defaults>
</compile_context>

<pallas_src>
import functools

import jax
import jax.numpy as jnp
from jax.experimental import pallas as pl
from jax.experimental.pallas import tpu as pltpu


# ---------------------------------------------------------------------------
# Kernel: the entire (B, T) problem in one step.
#   x_ref: (B, T, C) f32     w_ref: (C, 3*hs) bf16  (sqrt(C)*Wq | Wk | Wv)
#   o_ref: (B, T, hs) f32
# ---------------------------------------------------------------------------
def _head_kernel(x_ref, w_ref, o_ref, *, head_size):
    B, T, C = x_ref.shape
    hs = head_size

    # QKV projection: fold B into the MXU M dimension -> one fat matmul.
    x2d = x_ref[...].reshape(B * T, C).astype(jnp.bfloat16)          # (B*T, C)
    qkv = jnp.dot(x2d, w_ref[...],
                  preferred_element_type=jnp.float32)                # (B*T, 3*hs) f32

    # sqrt(C) scale is already folded into the Wq columns (done once in prep).
    q = qkv[:, :hs].reshape(B, T, hs)
    k = qkv[:, hs:2 * hs].reshape(B, T, hs)
    v = qkv[:, 2 * hs:].reshape(B, T, hs)

    # Batched logits: contract the last (head) dims directly, no k transpose.
    wei = jnp.einsum('btd,bsd->bts',
                     q.astype(jnp.bfloat16), k.astype(jnp.bfloat16),
                     preferred_element_type=jnp.float32)             # (B, T, T)

    # Numerically stable softmax, all in f32 (v5e has no bf16 VPU/EUP).
    wei = wei - jnp.max(wei, axis=-1, keepdims=True)
    p = jnp.exp(wei)
    inv = pl.reciprocal(jnp.sum(p, axis=-1, keepdims=True), approx=True)  # EUP slot
    attn = p * inv                                                    # dropout: identity at eval

    out = jnp.einsum('bts,bsd->btd',
                     attn.astype(jnp.bfloat16), v.astype(jnp.bfloat16),
                     preferred_element_type=jnp.float32)              # (B, T, hs)
    o_ref[...] = out.astype(o_ref.dtype)


# ---------------------------------------------------------------------------
# One-time weight preparation (hoisted out of the hot forward path).
# ---------------------------------------------------------------------------
def prepare_head_weights(wq, wk, wv):
    """Stack Wq|Wk|Wv into (C, 3*hs) bf16, folding the C**0.5 logit scale into Wq."""
    C = wq.shape[0]
    scale = float(C) ** 0.5                      # module multiplies logits by sqrt(C)
    return jnp.concatenate([wq * scale, wk, wv], axis=1).astype(jnp.bfloat16)


# ---------------------------------------------------------------------------
# Forward wrapper: single pallas_call, no grid, whole arrays resident in VMEM.
# ---------------------------------------------------------------------------
def head_forward(x, w_qkv, head_size):
    """x: (B, T, C) f32;  w_qkv: (C, 3*head_size) bf16 from prepare_head_weights."""
    B, T, C = x.shape
    hs = head_size
    kernel = functools.partial(_head_kernel, head_size=hs)
    return pl.pallas_call(
        kernel,
        out_shape=jax.ShapeDtypeStruct((B, T, hs), jnp.float32),
        in_specs=[
            pl.BlockSpec((B, T, C), lambda: (0, 0, 0)),
            pl.BlockSpec((C, 3 * hs), lambda: (0, 0)),
        ],
        out_specs=pl.BlockSpec((B, T, hs), lambda: (0, 0, 0)),
    )(x, w_qkv)


# ---------------------------------------------------------------------------
# Pure-JAX f32 reference (exactly the module's math)
# ---------------------------------------------------------------------------
def head_reference(x, wq, wk, wv):
    with jax.default_matmul_precision("highest"):
        C = x.shape[-1]
        q = x @ wq
        k = x @ wk
        v = x @ wv
        wei = (q @ jnp.swapaxes(k, -2, -1)) * (C ** 0.5)   # module multiplies by sqrt(C)
        wei = jax.nn.softmax(wei, axis=-1)                 # no causal mask in the spec
        return wei @ v                                     # dropout is identity at eval


if __name__ == "__main__":
    B, T, n_embd, head_size = 2, 8, 32, 16

    key = jax.random.PRNGKey(0)
    kx, kq, kk, kv = jax.random.split(key, 4)
    s = 0.02
    x = jax.random.normal(kx, (B, T, n_embd), jnp.float32)
    wq = jax.random.normal(kq, (n_embd, head_size), jnp.float32) * s
    wk = jax.random.normal(kk, (n_embd, head_size), jnp.float32) * s
    wv = jax.random.normal(kv, (n_embd, head_size), jnp.float32) * s

    # One-time weight prep (static across forwards), then the fused forward.
    w_qkv = jax.block_until_ready(prepare_head_weights(wq, wk, wv))
    out = jax.block_until_ready(head_forward(x, w_qkv, head_size))
    ref = jax.block_until_ready(head_reference(x, wq, wk, wv))

    assert out.shape == (B, T, head_size)
    # bf16 MXU operands + approx reciprocal -> slightly looser tolerance than pure f32
    assert jnp.allclose(out, ref, atol=5e-3, rtol=5e-2), float(jnp.max(jnp.abs(out - ref)))

    print("KERNEL_OK")
</pallas_src>

<mosaic_0001>
module attributes {stable_mosaic.version = 11 : i64} {
  func.func @_head_kernel(%arg0: memref<2x8x32xf32, #tpu.memory_space<vmem>>, %arg1: memref<32x48xbf16, #tpu.memory_space<vmem>>, %arg2: memref<2x8x16xf32, #tpu.memory_space<vmem>>) attributes {dimension_semantics = [], scalar_prefetch = 0 : i64, scratch_operands = 0 : i64, tpu.core_type = #tpu.core_type<tc>} {
    %c0 = arith.constant 0 : index
    %c0_0 = arith.constant 0 : index
    %c0_1 = arith.constant 0 : index
    %0 = vector.load %arg0[%c0, %c0_0, %c0_1] : memref<2x8x32xf32, #tpu.memory_space<vmem>>, vector<2x8x32xf32>
    %1 = vector.shape_cast %0 : vector<2x8x32xf32> to vector<16x32xf32>
    %2 = arith.truncf %1 : vector<16x32xf32> to vector<16x32xbf16>
    %c0_2 = arith.constant 0 : index
    %c0_3 = arith.constant 0 : index
    %3 = vector.load %arg1[%c0_2, %c0_3] : memref<32x48xbf16, #tpu.memory_space<vmem>>, vector<32x48xbf16>
    %cst = arith.constant dense<0.000000e+00> : vector<16x48xf32>
    %4 = tpu.matmul %2, %3, %cst {dimension_numbers = #tpu.dot_dimension_numbers<[1], [0], [0], [1], [0, 0, 1, 1], [], []>} : vector<16x32xbf16>, vector<32x48xbf16>, vector<16x48xf32> -> vector<16x48xf32>
    %5 = vector.extract_strided_slice %4 {offsets = [0, 0], sizes = [16, 16], strides = [1, 1]} : vector<16x48xf32> to vector<16x16xf32>
    %6 = vector.shape_cast %5 : vector<16x16xf32> to vector<2x8x16xf32>
    %7 = vector.extract_strided_slice %4 {offsets = [0, 16], sizes = [16, 16], strides = [1, 1]} : vector<16x48xf32> to vector<16x16xf32>
    %8 = vector.shape_cast %7 : vector<16x16xf32> to vector<2x8x16xf32>
    %9 = vector.extract_strided_slice %4 {offsets = [0, 32], sizes = [16, 16], strides = [1, 1]} : vector<16x48xf32> to vector<16x16xf32>
    %10 = vector.shape_cast %9 : vector<16x16xf32> to vector<2x8x16xf32>
    %11 = arith.truncf %6 : vector<2x8x16xf32> to vector<2x8x16xbf16>
    %12 = arith.truncf %8 : vector<2x8x16xf32> to vector<2x8x16xbf16>
    "tpu.trace_start"() <{level = 10 : i32, message = "btd,bsd->bts"}> : () -> ()
    %cst_4 = arith.constant dense<0.000000e+00> : vector<2x8x8xf32>
    %13 = tpu.matmul %11, %12, %cst_4 {dimension_numbers = #tpu.dot_dimension_numbers<[2], [2], [1], [1], [0, 0, 0, 1, 1, 1], [0], [0]>} : vector<2x8x16xbf16>, vector<2x8x16xbf16>, vector<2x8x8xf32> -> vector<2x8x8xf32>
    "tpu.trace_stop"() : () -> ()
    %cst_5 = arith.constant dense<0xFF800000> : vector<2x8xf32>
    %14 = vector.multi_reduction <maximumf>, %13, %cst_5 [2] : vector<2x8x8xf32> to vector<2x8xf32>
    %15 = vector.shape_cast %14 : vector<2x8xf32> to vector<2x8x1xf32>
    %16 = vector.broadcast %15 : vector<2x8x1xf32> to vector<2x8x8xf32>
    %17 = arith.subf %13, %16 : vector<2x8x8xf32>
    %18 = math.exp %17 : vector<2x8x8xf32>
    %cst_6 = arith.constant dense<0.000000e+00> : vector<2x8xf32>
    %19 = vector.multi_reduction <add>, %18, %cst_6 [2] : vector<2x8x8xf32> to vector<2x8xf32>
    %20 = vector.shape_cast %19 : vector<2x8xf32> to vector<2x8x1xf32>
    %21 = tpu.reciprocal %20 {approx = true} : vector<2x8x1xf32> -> vector<2x8x1xf32>
    %22 = vector.broadcast %21 : vector<2x8x1xf32> to vector<2x8x8xf32>
    %23 = arith.mulf %18, %22 : vector<2x8x8xf32>
    %24 = arith.truncf %23 : vector<2x8x8xf32> to vector<2x8x8xbf16>
    %25 = arith.truncf %10 : vector<2x8x16xf32> to vector<2x8x16xbf16>
    "tpu.trace_start"() <{level = 10 : i32, message = "bts,bsd->btd"}> : () -> ()
    %cst_7 = arith.constant dense<0.000000e+00> : vector<2x8x16xf32>
    %26 = tpu.matmul %24, %25, %cst_7 {dimension_numbers = #tpu.dot_dimension_numbers<[2], [1], [1], [2], [0, 0, 0, 1, 1, 2], [0], [0]>} : vector<2x8x8xbf16>, vector<2x8x16xbf16>, vector<2x8x16xf32> -> vector<2x8x16xf32>
    "tpu.trace_stop"() : () -> ()
    %c0_8 = arith.constant 0 : index
    %c0_9 = arith.constant 0 : index
    %c0_10 = arith.constant 0 : index
    %27 = vector.load %arg2[%c0_8, %c0_9, %c0_10] : memref<2x8x16xf32, #tpu.memory_space<vmem>>, vector<2x8x16xf32>
    tpu.vector_store %arg2[%c0_8, %c0_9, %c0_10], %26 {strides = array<i32>} : memref<2x8x16xf32, #tpu.memory_space<vmem>>, vector<2x8x16xf32>,
    return
  }
}

</mosaic_0001>

<llo_original>
// kernel: tpu_custom_call.1
$region0: #{tpu_custom_call.1}
  #allocation0 [shape = 'u32[]', space=smem, size = 0x4, offset = 0x4, fixed_abs, tag = 'smem constant byte address 0x4 - core index']
  #allocation1 [shape = 'u32[144,128]{1,0:T(1,128)}', space=vmem, size = 0x12000, scoped, tag = 'internal scratch']
  %s0 = inlined_call_operand.hbm [shape: f32[2,8,32], index: 0, kind: input, shape index: {}]
  %s1 = inlined_call_operand.hbm [shape: bf16[32,48], index: 1, kind: input, shape index: {}]
  %s2 = inlined_call_operand.hbm [shape: f32[2,8,16], index: 2, kind: output, shape index: {}]
  %s3 = sld [smem:[#allocation0]]
  $region26: #{tpu_custom_call.1} parent=0
    _
  %s5 = ssub.s32 1, %s3
  %s6 = scalar_select 0, %s5, %s3
  $region1: #{tpu_custom_call.1} parent=0
    #allocation2 [shape = 'u8[8192]{0}', space=vmem, size = 0x2000, scoped, tag = 'input window, operand 0, single buffered']
    #allocation3 [shape = 's32[1]{0}', space=sflag, size = 0x4, scoped, tag = 'scoped memory for tpu_custom_call.1']
    #allocation4 [shape = 's32[1]{0}', space=sflag, size = 0x4, scoped, tag = 'scoped memory for tpu_custom_call.1']
    #allocation5 [shape = 'u8[8192]{0}', space=vmem, size = 0x2000, scoped, tag = 'input window, operand 1, single buffered']
    #allocation6 [shape = 's32[1]{0}', space=sflag, size = 0x4, scoped, tag = 'scoped memory for tpu_custom_call.1']
    #allocation7 [shape = 'u8[8192]{0}', space=vmem, size = 0x2000, scoped, tag = 'output window, operand 0, single buffered']
    %7 = vsyncpa [#allocation3], 0
    %8 = vsyncpa [#allocation6], 0
    %9 = vsyncpa [#allocation4], 0
    // Predicated region
    $region2: #{tpu_custom_call.1} parent=1 // pred_check
      _
    $region3: #{tpu_custom_call.1} parent=1 // pred_check_branch
      %11 = sbr.rel (0) target = $region5
    $region4: #{tpu_custom_call.1} parent=1 // pred_region
      %s13 = ssub.s32 256, 256
      %14 = vsyncadd [#allocation3], %s13
      %s15 = sshll.u32 [#allocation2], 4
      %s16 = int_to_ptr.vmem [resolvable:$true] %s15
      %21 = dma.hbm_to_vmem [thread:$0]  %s0, 256, %s16, [#allocation3], 128, 128, 8
    $region5: #{tpu_custom_call.1} parent=1 // pred_fallthru
      _
    // Predicated region
    $region6: #{tpu_custom_call.1} parent=1 // pred_check
      _
    $region7: #{tpu_custom_call.1} parent=1 // pred_check_branch
      %23 = sbr.rel (0) target = $region9
    $region8: #{tpu_custom_call.1} parent=1 // pred_region
      %s25 = ssub.s32 256, 256
      %26 = vsyncadd [#allocation6], %s25
      %s27 = sshll.u32 [#allocation5], 4
      %s28 = int_to_ptr.vmem [resolvable:$true] %s27
      %33 = dma.hbm_to_vmem [thread:$0]  %s1, 256, %s28, [#allocation6], 64, 64, 4
    $region9: #{tpu_custom_call.1} parent=1 // pred_fallthru
      _
    // Predicated region
    $region10: #{tpu_custom_call.1} parent=1 // pred_check
      _
    $region11: #{tpu_custom_call.1} parent=1 // pred_check_branch
      %35 = sbr.rel (0) target = $region13
    $region12: #{tpu_custom_call.1} parent=1 // pred_region
      %36 = dma.done [#allocation3], 256
    $region13: #{tpu_custom_call.1} parent=1 // pred_fallthru
      _
    // Predicated region
    $region14: #{tpu_custom_call.1} parent=1 // pred_check
      _
    $region15: #{tpu_custom_call.1} parent=1 // pred_check_branch
      %38 = sbr.rel (0) target = $region17
    $region16: #{tpu_custom_call.1} parent=1 // pred_region
      %39 = dma.done [#allocation6], 256
    $region17: #{tpu_custom_call.1} parent=1 // pred_fallthru
      _
    %v41 = vld [vmem:[#allocation2] sm:$0xff]
    %v42 = vld [vmem:[#allocation2 + $0x8] sm:$0xff]
    %v43 = vpack.c.bf16 %v42, %v41
    %v44 = vld [vmem:[#allocation5] sm:$0xf]
    %v45 = vld [vmem:[#allocation5 + $0x4] sm:$0xf]
    %v46 = vld [vmem:[#allocation5 + $0x8] sm:$0xf]
    %v47 = vld [vmem:[#allocation5 + $0xc] sm:$0xf]
    %v52 = vunpack.c.l.b16 %v44
    %v53 = vunpack.c.l.b16 %v45
    %v54 = vunpack.c.l.b16 %v46
    %v55 = vunpack.c.l.b16 %v47
    %v56 = vpack.c.b16 %v53, %v52
    %v57 = vpack.c.b16 %v55, %v54
    %vm60 = vcmask 261120
    %v62 = vsel %vm60, %v43, 0
    %64 = vmatprep.subr.bf16.mxu0 0
    %65 = vmatpush1.bf16.msra.mxu0 0
    %66 = vmatprep.subr.bf16.mxu0 0
    %67 = vmatpush1.bf16.msra.mxu0 0
    %68 = vmatprep.subr.bf16.mxu0 0
    %69 = vmatpush1.bf16.msra.mxu0 0
    %70 = vmatprep.subr.bf16.mxu0 0
    %71 = vmatpush1.bf16.msra.mxu0 0
    %72 = vmatprep.subr.bf16.mxu0 0
    %73 = vmatpush1.bf16.msra.mxu0 0
    %74 = vmatprep.subr.bf16.mxu0 0
    %75 = vmatpush1.bf16.msra.mxu0 0
    %76 = vmatprep.subr.bf16.mxu0 0
    %77 = vmatpush1.bf16.msra.mxu0 %v57
    %78 = vmatprep.subr.bf16.mxu0 0
    %79 = vmatpush1.bf16.msra.mxu0 %v56
    %80 = vmatprep.subr.bf16.mxu0 0
    %81 = vmatpush2.bf16.msra.mxu0 0
    %82 = vmatprep.subr.bf16.mxu0 0
    %83 = vmatpush2.bf16.msra.mxu0 0
    %84 = vmatprep.subr.bf16.mxu0 0
    %85 = vmatpush2.bf16.msra.mxu0 0
    %86 = vmatprep.subr.bf16.mxu0 0
    %87 = vmatpush2.bf16.msra.mxu0 0
    %88 = vmatprep.subr.bf16.mxu0 0
    %89 = vmatpush2.bf16.msra.mxu0 0
    %90 = vmatprep.subr.bf16.mxu0 0
    %91 = vmatpush2.bf16.msra.mxu0 0
    %92 = vmatprep.subr.bf16.mxu0 0
    %93 = vmatpush2.bf16.msra.mxu0 0
    %94 = vmatprep.subr.bf16.mxu0 0
    %95 = vmatpush2.bf16.msra.mxu0 0
    %96 = vmatprep.mubr.bf16.mxu0 0
    %97 = vmatmul.mubr.bf16.gmra.mxu0 %v62
    %v98 = vpop.f32.mrf.mxu0
    %v99 = vadd.f32 0.0, %v98
    %v100 = vpop.f32.mrf.mxu0
    %v101 = vpop.f32.mrf.mxu0
    %v102 = vadd.f32 0.0, %v101
    %v103 = vpop.f32.mrf.mxu0
    %104 = vdwg.mxu0
    %v105 = vpack.c.bf16 %v99, %v99
    %v106 = vpack.c.bf16 %v102, %v102
    %108 = vrot.lane.b32.xlu0 %v105, 112
    %v109 = vpop.permute.xlu0 %108
    %vm110 = vcmask 130048
    %v112 = vsel %vm110, %v105, 0
    %v115 = vsel %vm110, %v109, 0
    %117 = vmatprep.subr.bf16.mxu0 0
    %118 = vmatpush1.bf16.xpose.msra.mxu0 0
    %119 = vmatprep.subr.bf16.mxu0 0
    %120 = vmatpush1.bf16.xpose.msra.mxu0 0
    %121 = vmatprep.subr.bf16.mxu0 0
    %122 = vmatpush1.bf16.xpose.msra.mxu0 0
    %123 = vmatprep.subr.bf16.mxu0 0
    %124 = vmatpush1.bf16.xpose.msra.mxu0 0
    %125 = vmatprep.subr.bf16.mxu0 0
    %126 = vmatpush1.bf16.xpose.msra.mxu0 0
    %127 = vmatprep.subr.bf16.mxu0 0
    %128 = vmatpush1.bf16.xpose.msra.mxu0 0
    %129 = vmatprep.subr.bf16.mxu0 0
    %130 = vmatpush1.bf16.xpose.msra.mxu0 0
    %131 = vmatprep.subr.bf16.mxu0 0
    %132 = vmatpush1.bf16.xpose.msra.mxu0 %v115
    %133 = vmatprep.subr.bf16.mxu0 0
    %134 = vmatpush2.bf16.xpose.msra.mxu0 0
    %135 = vmatprep.subr.bf16.mxu0 0
    %136 = vmatpush2.bf16.xpose.msra.mxu0 0
    %137 = vmatprep.subr.bf16.mxu0 0
    %138 = vmatpush2.bf16.xpose.msra.mxu0 0
    %139 = vmatprep.subr.bf16.mxu0 0
    %140 = vmatpush2.bf16.xpose.msra.mxu0 0
    %141 = vmatprep.subr.bf16.mxu0 0
    %142 = vmatpush2.bf16.xpose.msra.mxu0 0
    %143 = vmatprep.subr.bf16.mxu0 0
    %144 = vmatpush2.bf16.xpose.msra.mxu0 0
    %145 = vmatprep.subr.bf16.mxu0 0
    %146 = vmatpush2.bf16.xpose.msra.mxu0 0
    %147 = vmatprep.subr.bf16.mxu0 0
    %148 = vmatpush2.bf16.xpose.msra.mxu0 0
    %149 = vmatprep.mubr.bf16.mxu0 0
    %150 = vmatmul.mubr.bf16.gmra.mxu0 %v112
    %v151 = vpop.f32.mrf.mxu0
    %v152 = vadd.f32 0.0, %v151
    %v153 = vpop.f32.mrf.mxu0
    %v154 = vpop.f32.mrf.mxu0
    %v155 = vpop.f32.mrf.mxu0
    %156 = vdwg.mxu0
    %158 = vrot.lane.b32.xlu0 %v106, 112
    %v159 = vpop.permute.xlu0 %158
    %v161 = vsel %vm110, %v106, 0
    %v164 = vsel %vm110, %v159, 0
    %166 = vmatprep.subr.bf16.mxu0 0
    %167 = vmatpush1.bf16.xpose.msra.mxu0 0
    %168 = vmatprep.subr.bf16.mxu0 0
    %169 = vmatpush1.bf16.xpose.msra.mxu0 0
    %170 = vmatprep.subr.bf16.mxu0 0
    %171 = vmatpush1.bf16.xpose.msra.mxu0 0
    %172 = vmatprep.subr.bf16.mxu0 0
    %173 = vmatpush1.bf16.xpose.msra.mxu0 0
    %174 = vmatprep.subr.bf16.mxu0 0
    %175 = vmatpush1.bf16.xpose.msra.mxu0 0
    %176 = vmatprep.subr.bf16.mxu0 0
    %177 = vmatpush1.bf16.xpose.msra.mxu0 0
    %178 = vmatprep.subr.bf16.mxu0 0
    %179 = vmatpush1.bf16.xpose.msra.mxu0 0
    %180 = vmatprep.subr.bf16.mxu0 0
    %181 = vmatpush1.bf16.xpose.msra.mxu0 %v164
    %182 = vmatprep.subr.bf16.mxu0 0
    %183 = vmatpush2.bf16.xpose.msra.mxu0 0
    %184 = vmatprep.subr.bf16.mxu0 0
    %185 = vmatpush2.bf16.xpose.msra.mxu0 0
    %186 = vmatprep.subr.bf16.mxu0 0
    %187 = vmatpush2.bf16.xpose.msra.mxu0 0
    %188 = vmatprep.subr.bf16.mxu0 0
    %189 = vmatpush2.bf16.xpose.msra.mxu0 0
    %190 = vmatprep.subr.bf16.mxu0 0
    %191 = vmatpush2.bf16.xpose.msra.mxu0 0
    %192 = vmatprep.subr.bf16.mxu0 0
    %193 = vmatpush2.bf16.xpose.msra.mxu0 0
    %194 = vmatprep.subr.bf16.mxu0 0
    %195 = vmatpush2.bf16.xpose.msra.mxu0 0
    %196 = vmatprep.subr.bf16.mxu0 0
    %197 = vmatpush2.bf16.xpose.msra.mxu0 0
    %198 = vmatprep.mubr.bf16.mxu0 0
    %199 = vmatmul.mubr.bf16.gmra.mxu0 %v161
    %v200 = vpop.f32.mrf.mxu0
    %v201 = vadd.f32 0.0, %v200
    %v202 = vpop.f32.mrf.mxu0
    %v203 = vpop.f32.mrf.mxu0
    %v204 = vpop.f32.mrf.mxu0
    %205 = vdwg.mxu0
    %vm206 = vcmask 64512
    %v207 = vsel %vm206, %v152, -inf
    %208 = vmax.xlane.f32.xlu0 %v207
    %v209 = vpop.xlane.xlu0 %208
    %v210 = vsel %vm206, %v201, -inf
    %211 = vmax.xlane.f32.xlu0 %v210
    %v212 = vpop.xlane.xlu0 %211
    %v213 = vsub.f32 %v152, %v209
    %v214 = vsub.f32 %v201, %v212
    %v215 = vmul.f32 %v213, 1.442695
    %v216 = vpow.pop %v215
    %v217 = vmul.f32 %v214, 1.442695
    %v218 = vpow.pop %v217
    %v219 = vsel %vm206, %v216, 0.0
    %220 = vadd.xlane.f32.xlu0 %v219
    %v221 = vpop.xlane.xlu0 %220
    %v222 = vsel %vm206, %v218, 0.0
    %223 = vadd.xlane.f32.xlu0 %v222
    %v224 = vpop.xlane.xlu0 %223
    %v225 = vrcp.pop %v221
    %v226 = vrcp.pop %v224
    %v227 = vmul.f32 %v216, %v225
    %v228 = vmul.f32 %v218, %v226
    %v229 = vpack.c.bf16 %v227, %v227
    %v230 = vpack.c.bf16 %v228, %v228
    %231 = vrot.lane.b32.xlu0 %v105, 96
    %v232 = vpop.permute.xlu0 %231
    %v234 = vsel %vm206, %v229, 0
    %vm236 = vcmask 1043456
    %v238 = vsel %vm236, %v232, 0
    %240 = vmatprep.subr.bf16.mxu0 0
    %241 = vmatpush1.bf16.msra.mxu0 0
    %242 = vmatprep.subr.bf16.mxu0 0
    %243 = vmatpush1.bf16.msra.mxu0 0
    %244 = vmatprep.subr.bf16.mxu0 0
    %245 = vmatpush1.bf16.msra.mxu0 0
    %246 = vmatprep.subr.bf16.mxu0 0
    %247 = vmatpush1.bf16.msra.mxu0 0
    %248 = vmatprep.subr.bf16.mxu0 0
    %249 = vmatpush1.bf16.msra.mxu0 0
    %250 = vmatprep.subr.bf16.mxu0 0
    %251 = vmatpush1.bf16.msra.mxu0 0
    %252 = vmatprep.subr.bf16.mxu0 0
    %253 = vmatpush1.bf16.msra.mxu0 0
    %254 = vmatprep.subr.bf16.mxu0 0
    %255 = vmatpush1.bf16.msra.mxu0 %v238
    %256 = vmatprep.subr.bf16.mxu0 0
    %257 = vmatpush2.bf16.msra.mxu0 0
    %258 = vmatprep.subr.bf16.mxu0 0
    %259 = vmatpush2.bf16.msra.mxu0 0
    %260 = vmatprep.subr.bf16.mxu0 0
    %261 = vmatpush2.bf16.msra.mxu0 0
    %262 = vmatprep.subr.bf16.mxu0 0
    %263 = vmatpush2.bf16.msra.mxu0 0
    %264 = vmatprep.subr.bf16.mxu0 0
    %265 = vmatpush2.bf16.msra.mxu0 0
    %266 = vmatprep.subr.bf16.mxu0 0
    %267 = vmatpush2.bf16.msra.mxu0 0
    %268 = vmatprep.subr.bf16.mxu0 0
    %269 = vmatpush2.bf16.msra.mxu0 0
    %270 = vmatprep.subr.bf16.mxu0 0
    %271 = vmatpush2.bf16.msra.mxu0 0
    %272 = vmatprep.mubr.bf16.mxu0 0
    %273 = vmatmul.mubr.bf16.gmra.mxu0 %v234
    %v274 = vpop.f32.mrf.mxu0
    %v275 = vadd.f32 0.0, %v274
    %v276 = vpop.f32.mrf.mxu0
    %v277 = vpop.f32.mrf.mxu0
    %v278 = vpop.f32.mrf.mxu0
    %279 = vdwg.mxu0
    %280 = vrot.lane.b32.xlu0 %v106, 96
    %v281 = vpop.permute.xlu0 %280
    %v283 = vsel %vm206, %v230, 0
    %v286 = vsel %vm236, %v281, 0
    %288 = vmatprep.subr.bf16.mxu0 0
    %289 = vmatpush1.bf16.msra.mxu0 0
    %290 = vmatprep.subr.bf16.mxu0 0
    %291 = vmatpush1.bf16.msra.mxu0 0
    %292 = vmatprep.subr.bf16.mxu0 0
    %293 = vmatpush1.bf16.msra.mxu0 0
    %294 = vmatprep.subr.bf16.mxu0 0
    %295 = vmatpush1.bf16.msra.mxu0 0
    %296 = vmatprep.subr.bf16.mxu0 0
    %297 = vmatpush1.bf16.msra.mxu0 0
    %298 = vmatprep.subr.bf16.mxu0 0
    %299 = vmatpush1.bf16.msra.mxu0 0
    %300 = vmatprep.subr.bf16.mxu0 0
    %301 = vmatpush1.bf16.msra.mxu0 0
    %302 = vmatprep.subr.bf16.mxu0 0
    %303 = vmatpush1.bf16.msra.mxu0 %v286
    %304 = vmatprep.subr.bf16.mxu0 0
    %305 = vmatpush2.bf16.msra.mxu0 0
    %306 = vmatprep.subr.bf16.mxu0 0
    %307 = vmatpush2.bf16.msra.mxu0 0
    %308 = vmatprep.subr.bf16.mxu0 0
    %309 = vmatpush2.bf16.msra.mxu0 0
    %310 = vmatprep.subr.bf16.mxu0 0
    %311 = vmatpush2.bf16.msra.mxu0 0
    %312 = vmatprep.subr.bf16.mxu0 0
    %313 = vmatpush2.bf16.msra.mxu0 0
    %314 = vmatprep.subr.bf16.mxu0 0
    %315 = vmatpush2.bf16.msra.mxu0 0
    %316 = vmatprep.subr.bf16.mxu0 0
    %317 = vmatpush2.bf16.msra.mxu0 0
    %318 = vmatprep.subr.bf16.mxu0 0
    %319 = vmatpush2.bf16.msra.mxu0 0
    %320 = vmatprep.mubr.bf16.mxu0 0
    %321 = vmatmul.mubr.bf16.gmra.mxu0 %v283
    %v322 = vpop.f32.mrf.mxu0
    %v323 = vadd.f32 0.0, %v322
    %v324 = vpop.f32.mrf.mxu0
    %v325 = vpop.f32.mrf.mxu0
    %v326 = vpop.f32.mrf.mxu0
    %327 = vdwg.mxu0
    %328 = vst.msk [vmem:[#allocation7] sm:$0xff] %vm110, %v275
    %329 = vst.msk [vmem:[#allocation7 + $0x8] sm:$0xff] %vm110, %v323
    // Predicated region
    $region18: #{tpu_custom_call.1} parent=1 // pred_check
      _
    $region19: #{tpu_custom_call.1} parent=1 // pred_check_branch
      %331 = sbr.rel (0) target = $region21
    $region20: #{tpu_custom_call.1} parent=1 // pred_region
      %s333 = ssub.s32 256, 256
      %334 = vsyncadd [#allocation4], %s333
      %s335 = sshll.u32 [#allocation7], 4
      %s336 = int_to_ptr.vmem [resolvable:$true] %s335
      %341 = dma.vmem_to_hbm [thread:$0]  %s336, 256, %s2, [#allocation4], 128, 128, 8
    $region21: #{tpu_custom_call.1} parent=1 // pred_fallthru
      _
    // Predicated region
    $region22: #{tpu_custom_call.1} parent=1 // pred_check
      _
    $region23: #{tpu_custom_call.1} parent=1 // pred_check_branch
      %343 = sbr.rel (0) target = $region25
    $region24: #{tpu_custom_call.1} parent=1 // pred_region
      %344 = dma.done [#allocation4], 256
    $region25: #{tpu_custom_call.1} parent=1 // pred_fallthru
      _
    %345 = vsyncpa [#allocation3], 1
    %346 = vsyncpa [#allocation6], 1
    %347 = vsyncpa [#allocation4], 1

</llo_original>
